<compile_context>
chip_gen: v7x
topology: tpu7x:2x2x1
jax: 0.10.0
libtpu: 0.0.40
codegen_flags: <defaults>
</compile_context>

<pallas_src>
import math

import jax
import jax.numpy as jnp
from jax import lax
from jax.experimental import pallas as pl
from jax.experimental.pallas import tpu as pltpu

_LANE = 128
_SUBLANE = 8


def _round_up(x, m):
    return ((x + m - 1) // m) * m


def _default_n_parallel():
    # v7x has 2 TensorCores per chip; older generations have 1, where a
    # "parallel" grid axis is pure overhead.
    try:
        kind = jax.devices()[0].device_kind.lower()
    except Exception:
        return 1
    return 2 if ("v7" in kind or "7x" in kind) else 1


def _make_kernel(tile_rows, rows, num_blocks, steps):
    groups = tile_rows // _SUBLANE

    def kernel(pred_ref, tgt_ref, acc_ref):
        p = pl.program_id(0)
        t = pl.program_id(1)

        @pl.when(t == 0)
        def _():
            acc_ref[...] = jnp.zeros_like(acc_ref)

        bi = p * steps + t              # logical block id (may overshoot num_blocks)
        row_start = bi * tile_rows

        d = pred_ref[...].astype(jnp.float32) - tgt_ref[...].astype(jnp.float32)
        sq = d * d

        def reduce_to_acc(vals):
            # (tile_rows,128) -> (groups,8,128) sum over the leading dim: pure
            # VALU adds producing a single (8,128) vreg-sized partial.
            acc_ref[...] += jnp.sum(vals.reshape(groups, _SUBLANE, _LANE), axis=0)

        is_real = bi < num_blocks
        is_full = jnp.logical_and(is_real, row_start + tile_rows <= rows)
        is_partial = jnp.logical_and(is_real, row_start + tile_rows > rows)

        @pl.when(is_full)
        def _():
            reduce_to_acc(sq)

        @pl.when(is_partial)
        def _():
            # Only the last real block can be partial; rows beyond `rows` hold
            # undefined VMEM data after the clamped DMA, so mask the squared
            # difference (not just one operand) before reducing.
            row_ids = lax.broadcasted_iota(jnp.int32, sq.shape, 0)
            reduce_to_acc(jnp.where(row_ids < rows - row_start, sq, 0.0))

    return kernel


def joints_mse_loss(output, target, *, n_parallel=None,
                    block_bytes=2 * 1024 * 1024):
    """output, target: (B, J, H, W), any float dtype.  Returns scalar f32 loss."""
    assert output.shape == target.shape
    if n_parallel is None:
        n_parallel = _default_n_parallel()

    n = math.prod(output.shape)
    itemsize = jnp.dtype(output.dtype).itemsize
    rows = -(-n // _LANE)  # ceil(n / 128)

    def prep(x):
        flat = x.reshape(-1)          # contiguous reshape: free (no HBM copy)
        pad = rows * _LANE - n
        if pad:
            # Rare path (n not a multiple of 128): a <128-element zero pad of
            # BOTH operands (sum-neutral).  Real heatmap shapes never hit this.
            flat = jnp.pad(flat, (0, pad))
        return flat.reshape(rows, _LANE)

    pred2d = prep(output)
    tgt2d = prep(target)

    # Dtype-aware tile: ~block_bytes per input block, multiple of 8 rows,
    # shrunk for small inputs so each parallel slice still gets work.
    target_rows = max(_SUBLANE,
                      (block_bytes // (_LANE * itemsize)) // _SUBLANE * _SUBLANE)
    tile_rows = min(target_rows, _round_up(-(-rows // n_parallel), _SUBLANE))
    tile_rows = max(tile_rows, _SUBLANE)

    num_blocks = -(-rows // tile_rows)
    steps = -(-num_blocks // n_parallel)
    out_rows = n_parallel * _SUBLANE

    def in_index(p, t):
        # Clamp so the (at most n_parallel-1) overshoot steps re-read the last
        # real block instead of a fully out-of-bounds DMA; the kernel skips
        # their accumulation via the `bi < num_blocks` guard.
        return (jnp.minimum(p * steps + t, num_blocks - 1), 0)

    partials = pl.pallas_call(
        _make_kernel(tile_rows, rows, num_blocks, steps),
        out_shape=jax.ShapeDtypeStruct((out_rows, _LANE), jnp.float32),
        grid=(n_parallel, steps),
        in_specs=[
            pl.BlockSpec((tile_rows, _LANE), in_index),
            pl.BlockSpec((tile_rows, _LANE), in_index),
        ],
        out_specs=pl.BlockSpec((_SUBLANE, _LANE), lambda p, t: (p, 0)),
        compiler_params=pltpu.CompilerParams(
            dimension_semantics=("parallel", "arbitrary"),
            vmem_limit_bytes=32 * 1024 * 1024,
        ),
        cost_estimate=pl.CostEstimate(
            flops=3 * n,
            transcendentals=0,
            bytes_accessed=n * (itemsize + jnp.dtype(target.dtype).itemsize)
            + out_rows * _LANE * 4,
        ),
    )(pred2d, tgt2d)

    # Global mean == mean over joints of per-joint MSE (equal element counts).
    return jnp.sum(partials) / jnp.float32(n)


def joints_mse_loss_ref(output, target):
    """Pure-JAX reference mirroring the PyTorch per-joint loop."""
    B, J = output.shape[0], output.shape[1]
    pred = output.reshape(B, J, -1).astype(jnp.float32)
    tgt = target.reshape(B, J, -1).astype(jnp.float32)
    loss = 0.0
    for idx in range(J):
        loss += jnp.mean((pred[:, idx, :] - tgt[:, idx, :]) ** 2)
    return loss / J


if __name__ == "__main__":
    key = jax.random.PRNGKey(0)
    keys = jax.random.split(key, 8)

    # 1) Basic lane-aligned shape (single block).
    o1 = jax.random.normal(keys[0], (2, 4, 16, 16), dtype=jnp.float32)
    t1 = jax.random.normal(keys[1], (2, 4, 16, 16), dtype=jnp.float32)
    l1 = jax.block_until_ready(joints_mse_loss(o1, t1))
    r1 = jax.block_until_ready(joints_mse_loss_ref(o1, t1))
    assert jnp.allclose(l1, r1, rtol=1e-4, atol=1e-6), (l1, r1)

    # 2) Ragged element count (not a multiple of 128): tiny lane pad + in-kernel row mask.
    o2 = jax.random.normal(keys[2], (2, 3, 7, 9), dtype=jnp.float32)
    t2 = jax.random.normal(keys[3], (2, 3, 7, 9), dtype=jnp.float32)
    l2 = jax.block_until_ready(joints_mse_loss(o2, t2))
    r2 = jax.block_until_ready(joints_mse_loss_ref(o2, t2))
    assert jnp.allclose(l2, r2, rtol=1e-4, atol=1e-6), (l2, r2)

    # 3) Multi-step accumulation + explicit 2-way parallel axis + partial tail
    #    block + clamped duplicate step (small block_bytes forces many steps).
    o3 = jax.random.normal(keys[4], (4, 13, 64, 40), dtype=jnp.float32)
    t3 = jax.random.normal(keys[5], (4, 13, 64, 40), dtype=jnp.float32)
    l3 = jax.block_until_ready(
        joints_mse_loss(o3, t3, n_parallel=2, block_bytes=64 * 1024))
    r3 = jax.block_until_ready(joints_mse_loss_ref(o3, t3))
    assert jnp.allclose(l3, r3, rtol=1e-4, atol=1e-6), (l3, r3)

    # 4) bf16 inputs keep their native dtype through the DMA; math in f32.
    o4 = jax.random.normal(keys[6], (2, 8, 64, 48), dtype=jnp.bfloat16)
    t4 = jax.random.normal(keys[7], (2, 8, 64, 48), dtype=jnp.bfloat16)
    l4 = jax.block_until_ready(joints_mse_loss(o4, t4))
    r4 = jax.block_until_ready(joints_mse_loss_ref(o4, t4))
    assert jnp.allclose(l4, r4, rtol=1e-3, atol=1e-5), (l4, r4)

    print("KERNEL_OK")
</pallas_src>

<mosaic_0001>
module attributes {stable_mosaic.version = 11 : i64} {
  func.func @kernel(%arg0: i32, %arg1: i32, %arg2: memref<16x128xf32, #tpu.memory_space<vmem>>, %arg3: memref<16x128xf32, #tpu.memory_space<vmem>>, %arg4: memref<8x128xf32, #tpu.memory_space<vmem>>) attributes {dimension_semantics = [#tpu.dimension_semantics<parallel>, #tpu.dimension_semantics<arbitrary>], iteration_bounds = array<i64: 1, 1>, scalar_prefetch = 0 : i64, scratch_operands = 0 : i64, tpu.core_type = #tpu.core_type<tc>, window_params = [{transform_indices = @transform_0, window_bounds = array<i64: 16, 128>}, {transform_indices = @transform_1, window_bounds = array<i64: 16, 128>}, {transform_indices = @transform_2, window_bounds = array<i64: 8, 128>}]} {
    %c0_i32 = arith.constant 0 : i32
    %0 = arith.cmpi eq, %arg1, %c0_i32 : i32
    %1 = arith.extui %0 : i1 to i32
    %c0_i32_0 = arith.constant 0 : i32
    %2 = arith.cmpi ne, %1, %c0_i32_0 : i32
    scf.if %2 {
      %cst = arith.constant 0.000000e+00 : f32
      %21 = vector.broadcast %cst : f32 to vector<8x128xf32>
      %c0_11 = arith.constant 0 : index
      %c0_12 = arith.constant 0 : index
      %22 = vector.load %arg4[%c0_11, %c0_12] : memref<8x128xf32, #tpu.memory_space<vmem>>, vector<8x128xf32>
      tpu.vector_store %arg4[%c0_11, %c0_12], %21 {strides = array<i32>} : memref<8x128xf32, #tpu.memory_space<vmem>>, vector<8x128xf32>,
    } else {
    }
    %c1_i32 = arith.constant 1 : i32
    %3 = arith.muli %arg0, %c1_i32 : i32
    %4 = arith.addi %3, %arg1 : i32
    %c16_i32 = arith.constant 16 : i32
    %5 = arith.muli %4, %c16_i32 : i32
    %c0 = arith.constant 0 : index
    %c0_1 = arith.constant 0 : index
    %6 = vector.load %arg2[%c0, %c0_1] : memref<16x128xf32, #tpu.memory_space<vmem>>, vector<16x128xf32>
    %c0_2 = arith.constant 0 : index
    %c0_3 = arith.constant 0 : index
    %7 = vector.load %arg3[%c0_2, %c0_3] : memref<16x128xf32, #tpu.memory_space<vmem>>, vector<16x128xf32>
    %8 = arith.subf %6, %7 : vector<16x128xf32>
    %9 = arith.mulf %8, %8 : vector<16x128xf32>
    %c1_i32_4 = arith.constant 1 : i32
    %10 = arith.cmpi slt, %4, %c1_i32_4 : i32
    %c16_i32_5 = arith.constant 16 : i32
    %11 = arith.addi %5, %c16_i32_5 : i32
    %c16_i32_6 = arith.constant 16 : i32
    %12 = arith.cmpi sle, %11, %c16_i32_6 : i32
    %13 = arith.andi %10, %12 : i1
    %c16_i32_7 = arith.constant 16 : i32
    %14 = arith.addi %5, %c16_i32_7 : i32
    %c16_i32_8 = arith.constant 16 : i32
    %15 = arith.cmpi sgt, %14, %c16_i32_8 : i32
    %16 = arith.andi %10, %15 : i1
    %17 = arith.extui %13 : i1 to i32
    %c0_i32_9 = arith.constant 0 : i32
    %18 = arith.cmpi ne, %17, %c0_i32_9 : i32
    scf.if %18 {
      %c0_11 = arith.constant 0 : index
      %c0_12 = arith.constant 0 : index
      %21 = vector.load %arg4[%c0_11, %c0_12] : memref<8x128xf32, #tpu.memory_space<vmem>>, vector<8x128xf32>
      %22 = vector.shape_cast %9 : vector<16x128xf32> to vector<2x8x128xf32>
      %cst = arith.constant dense<0.000000e+00> : vector<8x128xf32>
      %23 = vector.multi_reduction <add>, %22, %cst [0] : vector<2x8x128xf32> to vector<8x128xf32>
      %24 = arith.addf %21, %23 : vector<8x128xf32>
      %c0_13 = arith.constant 0 : index
      %c0_14 = arith.constant 0 : index
      %25 = vector.load %arg4[%c0_13, %c0_14] : memref<8x128xf32, #tpu.memory_space<vmem>>, vector<8x128xf32>
      tpu.vector_store %arg4[%c0_13, %c0_14], %24 {strides = array<i32>} : memref<8x128xf32, #tpu.memory_space<vmem>>, vector<8x128xf32>,
    } else {
    }
    %19 = arith.extui %16 : i1 to i32
    %c0_i32_10 = arith.constant 0 : i32
    %20 = arith.cmpi ne, %19, %c0_i32_10 : i32
    scf.if %20 {
      %21 = tpu.iota {dimensions = array<i32: 0>} : vector<16x128xi32>
      %c16_i32_11 = arith.constant 16 : i32
      %22 = arith.subi %c16_i32_11, %5 : i32
      %23 = vector.broadcast %22 : i32 to vector<16x128xi32>
      %24 = arith.cmpi slt, %21, %23 : vector<16x128xi32>
      %cst = arith.constant 0.000000e+00 : f32
      %25 = vector.broadcast %cst : f32 to vector<16x128xf32>
      %26 = arith.select %24, %9, %25 : vector<16x128xi1>, vector<16x128xf32>
      %c0_12 = arith.constant 0 : index
      %c0_13 = arith.constant 0 : index
      %27 = vector.load %arg4[%c0_12, %c0_13] : memref<8x128xf32, #tpu.memory_space<vmem>>, vector<8x128xf32>
      %28 = vector.shape_cast %26 : vector<16x128xf32> to vector<2x8x128xf32>
      %cst_14 = arith.constant dense<0.000000e+00> : vector<8x128xf32>
      %29 = vector.multi_reduction <add>, %28, %cst_14 [0] : vector<2x8x128xf32> to vector<8x128xf32>
      %30 = arith.addf %27, %29 : vector<8x128xf32>
      %c0_15 = arith.constant 0 : index
      %c0_16 = arith.constant 0 : index
      %31 = vector.load %arg4[%c0_15, %c0_16] : memref<8x128xf32, #tpu.memory_space<vmem>>, vector<8x128xf32>
      tpu.vector_store %arg4[%c0_15, %c0_16], %30 {strides = array<i32>} : memref<8x128xf32, #tpu.memory_space<vmem>>, vector<8x128xf32>,
    } else {
    }
    return
  }
  func.func @transform_0(%arg0: i32, %arg1: i32) -> (i32, i32) {
    %c1_i32 = arith.constant 1 : i32
    %0 = arith.muli %arg0, %c1_i32 : i32
    %1 = arith.addi %0, %arg1 : i32
    %c0_i32 = arith.constant 0 : i32
    %2 = arith.minsi %1, %c0_i32 : i32
    %c0_i32_0 = arith.constant 0 : i32
    %c0_i32_1 = arith.constant 0 : i32
    return %2, %c0_i32_0 : i32, i32
  }
  func.func @transform_1(%arg0: i32, %arg1: i32) -> (i32, i32) {
    %c1_i32 = arith.constant 1 : i32
    %0 = arith.muli %arg0, %c1_i32 : i32
    %1 = arith.addi %0, %arg1 : i32
    %c0_i32 = arith.constant 0 : i32
    %2 = arith.minsi %1, %c0_i32 : i32
    %c0_i32_0 = arith.constant 0 : i32
    %c0_i32_1 = arith.constant 0 : i32
    return %2, %c0_i32_0 : i32, i32
  }
  func.func @transform_2(%arg0: i32, %arg1: i32) -> (i32, i32) {
    %c0_i32 = arith.constant 0 : i32
    %c0_i32_0 = arith.constant 0 : i32
    return %arg0, %c0_i32 : i32, i32
  }
}

</mosaic_0001>

<llo_original>
// kernel: tpu_custom_call.1
$region0: #{tpu_custom_call.1}
  #allocation0 [shape = 'u32[]', space=smem, size = 0x4, offset = 0x4, fixed_abs, tag = 'smem constant byte address 0x4 - core index']
  #allocation1 [shape = 'u32[144,128]{1,0:T(1,128)}', space=vmem, size = 0x12000, scoped, tag = 'internal scratch']
  %s0 = inlined_call_operand.hbm [shape: f32[16,128], index: 0, kind: input, shape index: {}]
  %s1 = inlined_call_operand.hbm [shape: f32[16,128], index: 1, kind: input, shape index: {}]
  %s2 = inlined_call_operand.hbm [shape: f32[8,128], index: 2, kind: output, shape index: {}]
  %s3 = sld [smem:[#allocation0]]
  $region38: #{tpu_custom_call.1} parent=0
    _
  %s5 = ssub.s32 1, %s3
  %s6 = scalar_select 0, %s5, %s3
  $region1: #{tpu_custom_call.1} parent=0
    #allocation2 [shape = 'u8[8192]{0}', space=vmem, size = 0x2000, scoped, tag = 'input window, operand 0, single buffered']
    #allocation3 [shape = 's32[1]{0}', space=sflag, size = 0x4, scoped, tag = 'scoped memory for tpu_custom_call.1']
    #allocation4 [shape = 's32[1]{0}', space=sflag, size = 0x4, scoped, tag = 'scoped memory for tpu_custom_call.1']
    #allocation5 [shape = 'u8[8192]{0}', space=vmem, size = 0x2000, scoped, tag = 'input window, operand 1, single buffered']
    #allocation6 [shape = 's32[1]{0}', space=sflag, size = 0x4, scoped, tag = 'scoped memory for tpu_custom_call.1']
    #allocation7 [shape = 'u8[4096]{0}', space=vmem, size = 0x1000, scoped, tag = 'output window, operand 0, single buffered']
    %7 = vsyncpa [#allocation3], 0
    %8 = vsyncpa [#allocation6], 0
    %9 = vsyncpa [#allocation4], 0
    // Predicated region
    $region2: #{tpu_custom_call.1} parent=1 // pred_check
      _
    $region3: #{tpu_custom_call.1} parent=1 // pred_check_branch
      %11 = sbr.rel (0) target = $region5
    $region4: #{tpu_custom_call.1} parent=1 // pred_region
      %s12 = sadd.s32 0, 0
      %p13 = scmp.lt.s32.totalorder %s12, 0
      %s14 = scalar_select %p13, %s12, 0
      %s15 = smul.u32 2, %s14
      %s17 = ssub.s32 256, 256
      %18 = vsyncadd [#allocation3], %s17
      %s19 = smul.addr %s15, 128
      %s20 = scalar_lea.hbm %s0, %s19
      %s21 = sshll.u32 [#allocation2], 4
      %s22 = int_to_ptr.vmem [resolvable:$true] %s21
      %27 = dma.hbm_to_vmem [thread:$0]  %s20, 256, %s22, [#allocation3], 128, 128, 8
    $region5: #{tpu_custom_call.1} parent=1 // pred_fallthru
      _
    // Predicated region
    $region6: #{tpu_custom_call.1} parent=1 // pred_check
      _
    $region7: #{tpu_custom_call.1} parent=1 // pred_check_branch
      %29 = sbr.rel (0) target = $region9
    $region8: #{tpu_custom_call.1} parent=1 // pred_region
      %s30 = sadd.s32 0, 0
      %p31 = scmp.lt.s32.totalorder %s30, 0
      %s32 = scalar_select %p31, %s30, 0
      %s33 = smul.u32 2, %s32
      %s35 = ssub.s32 256, 256
      %36 = vsyncadd [#allocation6], %s35
      %s37 = smul.addr %s33, 128
      %s38 = scalar_lea.hbm %s1, %s37
      %s39 = sshll.u32 [#allocation5], 4
      %s40 = int_to_ptr.vmem [resolvable:$true] %s39
      %45 = dma.hbm_to_vmem [thread:$0]  %s38, 256, %s40, [#allocation6], 128, 128, 8
    $region9: #{tpu_custom_call.1} parent=1 // pred_fallthru
      _
    // Predicated region
    $region10: #{tpu_custom_call.1} parent=1 // pred_check
      _
    $region11: #{tpu_custom_call.1} parent=1 // pred_check_branch
      %47 = sbr.rel (0) target = $region13
    $region12: #{tpu_custom_call.1} parent=1 // pred_region
      %48 = dma.done [#allocation3], 256
    $region13: #{tpu_custom_call.1} parent=1 // pred_fallthru
      _
    // Predicated region
    $region14: #{tpu_custom_call.1} parent=1 // pred_check
      _
    $region15: #{tpu_custom_call.1} parent=1 // pred_check_branch
      %50 = sbr.rel (0) target = $region17
    $region16: #{tpu_custom_call.1} parent=1 // pred_region
      %51 = dma.done [#allocation6], 256
    $region17: #{tpu_custom_call.1} parent=1 // pred_fallthru
      _
    %s52 = sadd.s32 0, 0
    %p53 = scmp.lt.s32.totalorder %s52, 0
    %s54 = scalar_select %p53, %s52, 0
    %s55 = smul.u32 2, %s54
    %s56 = sadd.s32 0, 0
    %p57 = scmp.lt.s32.totalorder %s56, 0
    %s58 = scalar_select %p57, %s56, 0
    %s59 = smul.u32 2, %s58
    %p60 = scmp.eq.s32.totalorder 0, 0
    // Predicated region
    $region18: #{tpu_custom_call.1} parent=1 // pred_check
      %p61 = pneg %p60
    $region19: #{tpu_custom_call.1} parent=1 // pred_check_branch
      %63 = sbr.rel (%p61) target = $region21
    $region20: #{tpu_custom_call.1} parent=1 // pred_region
      %64 = vst [vmem:[#allocation7] sm:$0xff] 0.0
    $region21: #{tpu_custom_call.1} parent=1 // pred_fallthru
      _
    %s65 = sadd.s32 0, 0
    %s66 = smul.u32 %s65, 16
    %v67 = vld [vmem:[#allocation2] sm:$0xff]
    %v68 = vld [vmem:[#allocation2 + $0x8] sm:$0xff]
    %v69 = vld [vmem:[#allocation5] sm:$0xff]
    %v70 = vld [vmem:[#allocation5 + $0x8] sm:$0xff]
    %v71 = vsub.f32 %v67, %v69
    %v72 = vsub.f32 %v68, %v70
    %v73 = vmul.f32 %v71, %v71
    %v74 = vmul.f32 %v72, %v72
    %p75 = scmp.lt.s32.totalorder %s65, 1
    %s76 = sadd.s32 %s66, 16
    %p77 = scmp.le.s32.totalorder %s76, 16
    %p78 = pnand %p75, %p77
    %p79 = pneg %p78
    %p80 = scmp.gt.s32.totalorder %s76, 16
    %p81 = pnand %p75, %p80
    %p82 = pneg %p81
    // Predicated region
    $region22: #{tpu_custom_call.1} parent=1 // pred_check
      _
    $region23: #{tpu_custom_call.1} parent=1 // pred_check_branch
      %84 = sbr.rel (%p78) target = $region25
    $region24: #{tpu_custom_call.1} parent=1 // pred_region
      %v85 = vld [vmem:[#allocation7] sm:$0xff]
      %v86 = vadd.f32 %v73, %v74
      %v87 = vadd.f32 %v85, %v86
      %88 = vst [vmem:[#allocation7] sm:$0xff] %v87
    $region25: #{tpu_custom_call.1} parent=1 // pred_fallthru
      _
    // Predicated region
    $region26: #{tpu_custom_call.1} parent=1 // pred_check
      _
    $region27: #{tpu_custom_call.1} parent=1 // pred_check_branch
      %90 = sbr.rel (%p81) target = $region29
    $region28: #{tpu_custom_call.1} parent=1 // pred_region
      %v91 = vlaneseq
      %v92 = vshrl.u32 %v91, 7
      %v93 = vadd.s32 %v92, 8
      %s94 = ssub.s32 16, %s66
      %v95 = vstv %s94
      %vm96 = vcmp.lt.s32.totalorder %v92, %v95
      %vm97 = vcmp.lt.s32.totalorder %v93, %v95
      %v98 = vsel %vm96, %v73, 0.0
      %v99 = vsel %vm97, %v74, 0.0
      %v100 = vld [vmem:[#allocation7] sm:$0xff]
      %v101 = vadd.f32 %v98, %v99
      %v102 = vadd.f32 %v100, %v101
      %103 = vst [vmem:[#allocation7] sm:$0xff] %v102
    $region29: #{tpu_custom_call.1} parent=1 // pred_fallthru
      _
    // Predicated region
    $region30: #{tpu_custom_call.1} parent=1 // pred_check
      _
    $region31: #{tpu_custom_call.1} parent=1 // pred_check_branch
      %105 = sbr.rel (0) target = $region33
    $region32: #{tpu_custom_call.1} parent=1 // pred_region
      %s107 = ssub.s32 128, 128
      %108 = vsyncadd [#allocation4], %s107
      %s110 = sshll.u32 [#allocation7], 4
      %s111 = int_to_ptr.vmem [resolvable:$true] %s110
      %113 = dma.vmem_to_hbm [thread:$0]  %s111, 128, %s2, [#allocation4]
    $region33: #{tpu_custom_call.1} parent=1 // pred_fallthru
      _
    // Predicated region
    $region34: #{tpu_custom_call.1} parent=1 // pred_check
      _
    $region35: #{tpu_custom_call.1} parent=1 // pred_check_branch
      %115 = sbr.rel (0) target = $region37
    $region36: #{tpu_custom_call.1} parent=1 // pred_region
      %116 = dma.done [#allocation4], 128
    $region37: #{tpu_custom_call.1} parent=1 // pred_fallthru
      _
    %117 = vsyncpa [#allocation3], 1
    %118 = vsyncpa [#allocation6], 1
    %119 = vsyncpa [#allocation4], 1

</llo_original>
